<compile_context>
chip_gen: v5e
topology: v5e:2x2
jax: 0.10.0
libtpu: 0.0.40
codegen_flags: <defaults>
</compile_context>

<pallas_src>
import jax
import jax.numpy as jnp
from jax.experimental import pallas as pl
from jax.experimental.pallas import tpu as pltpu


def _dice_sums_kernel(x_ref, t_ref, inter_ref, card_ref):
    # x_ref, t_ref   : (TB, C, THW) input tiles
    # inter_ref      : (TB, C) per-class intersection accumulator (resident across HW axis)
    # card_ref       : (TB, C) per-class cardinality accumulator (resident across HW axis)
    hw = pl.program_id(1)

    @pl.when(hw == 0)
    def _init():
        inter_ref[...] = jnp.zeros_like(inter_ref)
        card_ref[...] = jnp.zeros_like(card_ref)

    x = x_ref[...]
    t = t_ref[...]
    if x.dtype != jnp.float32:  # single deliberate up-cast (bf16 inputs on v5e etc.)
        x = x.astype(jnp.float32)
    if t.dtype != jnp.float32:
        t = t.astype(jnp.float32)

    # Softmax over the channel axis (dim=1 of NCHW); per-pixel, so spatial tiling is exact.
    m = jnp.max(x, axis=1, keepdims=True)
    e = jnp.exp(x - m)
    # approx=True (EUP) would be ~free but does not meet the 1e-5 check tolerance; keep exact.
    p = e * pl.reciprocal(jnp.sum(e, axis=1, keepdims=True), approx=False)

    # Spatial partial reductions (dims (2, 3) of NCHW == the lane axis here).
    inter_ref[...] += jnp.sum(p * t, axis=2)                      # (TB, C)
    card_ref[...] += jnp.sum(p, axis=2) + jnp.sum(t, axis=2)      # (TB, C), no p+t temporary


def _select_tiles(N, C, HW, itemsize):
    """Pick (TB, THW): biggest bandwidth-friendly block that stays VMEM-safe.

    Budget ~4 MiB per input block  =>  2 inputs x 2 pipeline buffers ~= 16 MiB,
    comfortably inside the 32 MiB default scoped VMEM limit on v5e/v6e/v7x.
    """
    budget = 4 * 1024 * 1024
    row_bytes = C * HW * itemsize              # one batch element, full spatial extent
    if row_bytes <= budget:
        tb = min(N, max(1, budget // row_bytes))
        return tb, HW
    # One batch row is too large: tile the spatial axis (multiple of 128 lanes).
    thw = max(128, (budget // (C * itemsize)) // 128 * 128)
    thw = min(thw, HW)
    # Keep the reduction exact: only tile if THW divides HW (no garbage padding in sums).
    while thw > 128 and HW % thw != 0:
        thw -= 128
    if HW % thw != 0:
        thw = HW
    return 1, thw


def weighted_dice_loss(inputs, targets, weights=None, smooth=1e-5):
    """inputs, targets: (N, C, H, W). weights: (C,) or None. Returns scalar loss."""
    N, C, H, W = inputs.shape
    HW = H * W
    x = inputs.reshape(N, C, HW)
    t = targets.reshape(N, C, HW)

    itemsize = jnp.dtype(x.dtype).itemsize
    TB, THW = _select_tiles(N, C, HW, itemsize)
    nb = pl.cdiv(N, TB)
    nhw = HW // THW

    inter, card = pl.pallas_call(
        _dice_sums_kernel,
        out_shape=(
            jax.ShapeDtypeStruct((nb, TB, C), jnp.float32),
            jax.ShapeDtypeStruct((nb, TB, C), jnp.float32),
        ),
        grid=(nb, nhw),
        in_specs=[
            pl.BlockSpec((TB, C, THW), lambda b, h: (b, 0, h)),
            pl.BlockSpec((TB, C, THW), lambda b, h: (b, 0, h)),
        ],
        out_specs=(
            pl.BlockSpec((None, TB, C), lambda b, h: (b, 0, 0)),
            pl.BlockSpec((None, TB, C), lambda b, h: (b, 0, 0)),
        ),
        compiler_params=pltpu.CompilerParams(
            # batch axis independent (v7x dual-TC split), spatial reduction axis last.
            dimension_semantics=("parallel", "arbitrary"),
        ),
    )(x, t)

    # Drop padded batch rows (if N % TB != 0) and finish the tiny per-class arithmetic in XLA.
    inter = inter.reshape(nb * TB, C)[:N]
    card = card.reshape(nb * TB, C)[:N]
    dice = 1.0 - (2.0 * inter + smooth) / (card + smooth)
    if weights is not None:
        dice = dice * weights.reshape(1, C).astype(dice.dtype)
    return jnp.sum(dice) / N


def weighted_dice_loss_ref(inputs, targets, weights, smooth=1e-5):
    p = jax.nn.softmax(inputs, axis=1)
    intersection = jnp.sum(p * targets, axis=(2, 3))
    cardinality = jnp.sum(p + targets, axis=(2, 3))
    dice = 1.0 - (2.0 * intersection + smooth) / (cardinality + smooth)
    dice = dice * weights[None, :]
    return jnp.sum(dice) / inputs.shape[0]


if __name__ == "__main__":
    key = jax.random.PRNGKey(0)
    k1, k2 = jax.random.split(key)

    N, C, H, W = 2, 4, 16, 16
    inputs = jax.random.normal(k1, (N, C, H, W), dtype=jnp.float32)
    # targets: deterministic pseudo one-hot-ish mask values in [0, 1]
    targets = jax.random.uniform(k2, (N, C, H, W), dtype=jnp.float32)
    # per-class weights (module's optional `weights` of shape (C,))
    weights = jnp.array([1.0, 2.0, 0.5, 1.5], dtype=jnp.float32)

    loss = weighted_dice_loss(inputs, targets, weights)
    loss = jax.block_until_ready(loss)

    ref = weighted_dice_loss_ref(inputs, targets, weights)
    assert jnp.allclose(loss, ref, atol=1e-5, rtol=1e-5), (loss, ref)

    print("KERNEL_OK")
</pallas_src>

<mosaic_0001>
module attributes {stable_mosaic.version = 11 : i64} {
  func.func @_dice_sums_kernel(%arg0: i32, %arg1: i32, %arg2: memref<2x4x256xf32, #tpu.memory_space<vmem>>, %arg3: memref<2x4x256xf32, #tpu.memory_space<vmem>>, %arg4: memref<1x2x4xf32, #tpu.memory_space<vmem>>, %arg5: memref<1x2x4xf32, #tpu.memory_space<vmem>>) attributes {dimension_semantics = [#tpu.dimension_semantics<parallel>, #tpu.dimension_semantics<arbitrary>], iteration_bounds = array<i64: 1, 1>, scalar_prefetch = 0 : i64, scratch_operands = 0 : i64, tpu.core_type = #tpu.core_type<tc>, window_params = [{transform_indices = @transform_0, window_bounds = array<i64: 2, 4, 256>}, {transform_indices = @transform_1, window_bounds = array<i64: 2, 4, 256>}, {transform_indices = @transform_2, window_bounds = array<i64: 1, 2, 4>}, {transform_indices = @transform_3, window_bounds = array<i64: 1, 2, 4>}]} {
    %c0_i32 = arith.constant 0 : i32
    %0 = arith.cmpi eq, %arg1, %c0_i32 : i32
    %1 = arith.extui %0 : i1 to i32
    %c0_i32_0 = arith.constant 0 : i32
    %2 = arith.cmpi ne, %1, %c0_i32_0 : i32
    scf.if %2 {
      %cst_22 = arith.constant 0.000000e+00 : f32
      %32 = vector.broadcast %cst_22 : f32 to vector<2x4xf32>
      %c0_23 = arith.constant 0 : index
      %c0_24 = arith.constant 0 : index
      %c0_25 = arith.constant 0 : index
      %33 = vector.load %arg4[%c0_23, %c0_24, %c0_25] : memref<1x2x4xf32, #tpu.memory_space<vmem>>, vector<1x2x4xf32>
      %34 = vector.shape_cast %33 : vector<1x2x4xf32> to vector<2x4xf32>
      %35 = vector.shape_cast %32 : vector<2x4xf32> to vector<1x2x4xf32>
      tpu.vector_store %arg4[%c0_23, %c0_24, %c0_25], %35 {strides = array<i32>} : memref<1x2x4xf32, #tpu.memory_space<vmem>>, vector<1x2x4xf32>,
      %cst_26 = arith.constant 0.000000e+00 : f32
      %36 = vector.broadcast %cst_26 : f32 to vector<2x4xf32>
      %c0_27 = arith.constant 0 : index
      %c0_28 = arith.constant 0 : index
      %c0_29 = arith.constant 0 : index
      %37 = vector.load %arg5[%c0_27, %c0_28, %c0_29] : memref<1x2x4xf32, #tpu.memory_space<vmem>>, vector<1x2x4xf32>
      %38 = vector.shape_cast %37 : vector<1x2x4xf32> to vector<2x4xf32>
      %39 = vector.shape_cast %36 : vector<2x4xf32> to vector<1x2x4xf32>
      tpu.vector_store %arg5[%c0_27, %c0_28, %c0_29], %39 {strides = array<i32>} : memref<1x2x4xf32, #tpu.memory_space<vmem>>, vector<1x2x4xf32>,
    } else {
    }
    %c0 = arith.constant 0 : index
    %c0_1 = arith.constant 0 : index
    %c0_2 = arith.constant 0 : index
    %3 = vector.load %arg2[%c0, %c0_1, %c0_2] : memref<2x4x256xf32, #tpu.memory_space<vmem>>, vector<2x4x256xf32>
    %c0_3 = arith.constant 0 : index
    %c0_4 = arith.constant 0 : index
    %c0_5 = arith.constant 0 : index
    %4 = vector.load %arg3[%c0_3, %c0_4, %c0_5] : memref<2x4x256xf32, #tpu.memory_space<vmem>>, vector<2x4x256xf32>
    %cst = arith.constant dense<0xFF800000> : vector<2x256xf32>
    %5 = vector.multi_reduction <maximumf>, %3, %cst [1] : vector<2x4x256xf32> to vector<2x256xf32>
    %6 = vector.shape_cast %5 : vector<2x256xf32> to vector<2x1x256xf32>
    %7 = vector.broadcast %6 : vector<2x1x256xf32> to vector<2x4x256xf32>
    %8 = arith.subf %3, %7 : vector<2x4x256xf32>
    %9 = math.exp %8 : vector<2x4x256xf32>
    %cst_6 = arith.constant dense<0.000000e+00> : vector<2x256xf32>
    %10 = vector.multi_reduction <add>, %9, %cst_6 [1] : vector<2x4x256xf32> to vector<2x256xf32>
    %11 = vector.shape_cast %10 : vector<2x256xf32> to vector<2x1x256xf32>
    %12 = tpu.reciprocal %11 : vector<2x1x256xf32> -> vector<2x1x256xf32>
    %13 = vector.broadcast %12 : vector<2x1x256xf32> to vector<2x4x256xf32>
    %14 = arith.mulf %9, %13 : vector<2x4x256xf32>
    %c0_7 = arith.constant 0 : index
    %c0_8 = arith.constant 0 : index
    %c0_9 = arith.constant 0 : index
    %15 = vector.load %arg4[%c0_7, %c0_8, %c0_9] : memref<1x2x4xf32, #tpu.memory_space<vmem>>, vector<1x2x4xf32>
    %16 = vector.shape_cast %15 : vector<1x2x4xf32> to vector<2x4xf32>
    %17 = arith.mulf %14, %4 : vector<2x4x256xf32>
    %cst_10 = arith.constant dense<0.000000e+00> : vector<2x4xf32>
    %18 = vector.multi_reduction <add>, %17, %cst_10 [2] : vector<2x4x256xf32> to vector<2x4xf32>
    %19 = arith.addf %16, %18 : vector<2x4xf32>
    %c0_11 = arith.constant 0 : index
    %c0_12 = arith.constant 0 : index
    %c0_13 = arith.constant 0 : index
    %20 = vector.load %arg4[%c0_11, %c0_12, %c0_13] : memref<1x2x4xf32, #tpu.memory_space<vmem>>, vector<1x2x4xf32>
    %21 = vector.shape_cast %20 : vector<1x2x4xf32> to vector<2x4xf32>
    %22 = vector.shape_cast %19 : vector<2x4xf32> to vector<1x2x4xf32>
    tpu.vector_store %arg4[%c0_11, %c0_12, %c0_13], %22 {strides = array<i32>} : memref<1x2x4xf32, #tpu.memory_space<vmem>>, vector<1x2x4xf32>,
    %c0_14 = arith.constant 0 : index
    %c0_15 = arith.constant 0 : index
    %c0_16 = arith.constant 0 : index
    %23 = vector.load %arg5[%c0_14, %c0_15, %c0_16] : memref<1x2x4xf32, #tpu.memory_space<vmem>>, vector<1x2x4xf32>
    %24 = vector.shape_cast %23 : vector<1x2x4xf32> to vector<2x4xf32>
    %cst_17 = arith.constant dense<0.000000e+00> : vector<2x4xf32>
    %25 = vector.multi_reduction <add>, %14, %cst_17 [2] : vector<2x4x256xf32> to vector<2x4xf32>
    %cst_18 = arith.constant dense<0.000000e+00> : vector<2x4xf32>
    %26 = vector.multi_reduction <add>, %4, %cst_18 [2] : vector<2x4x256xf32> to vector<2x4xf32>
    %27 = arith.addf %25, %26 : vector<2x4xf32>
    %28 = arith.addf %24, %27 : vector<2x4xf32>
    %c0_19 = arith.constant 0 : index
    %c0_20 = arith.constant 0 : index
    %c0_21 = arith.constant 0 : index
    %29 = vector.load %arg5[%c0_19, %c0_20, %c0_21] : memref<1x2x4xf32, #tpu.memory_space<vmem>>, vector<1x2x4xf32>
    %30 = vector.shape_cast %29 : vector<1x2x4xf32> to vector<2x4xf32>
    %31 = vector.shape_cast %28 : vector<2x4xf32> to vector<1x2x4xf32>
    tpu.vector_store %arg5[%c0_19, %c0_20, %c0_21], %31 {strides = array<i32>} : memref<1x2x4xf32, #tpu.memory_space<vmem>>, vector<1x2x4xf32>,
    return
  }
  func.func @transform_0(%arg0: i32, %arg1: i32) -> (i32, i32, i32) {
    %c0_i32 = arith.constant 0 : i32
    %c0_i32_0 = arith.constant 0 : i32
    return %arg0, %c0_i32, %arg1 : i32, i32, i32
  }
  func.func @transform_1(%arg0: i32, %arg1: i32) -> (i32, i32, i32) {
    %c0_i32 = arith.constant 0 : i32
    %c0_i32_0 = arith.constant 0 : i32
    return %arg0, %c0_i32, %arg1 : i32, i32, i32
  }
  func.func @transform_2(%arg0: i32, %arg1: i32) -> (i32, i32, i32) {
    %c0_i32 = arith.constant 0 : i32
    %c0_i32_0 = arith.constant 0 : i32
    %c0_i32_1 = arith.constant 0 : i32
    return %arg0, %c0_i32, %c0_i32_0 : i32, i32, i32
  }
  func.func @transform_3(%arg0: i32, %arg1: i32) -> (i32, i32, i32) {
    %c0_i32 = arith.constant 0 : i32
    %c0_i32_0 = arith.constant 0 : i32
    %c0_i32_1 = arith.constant 0 : i32
    return %arg0, %c0_i32, %c0_i32_0 : i32, i32, i32
  }
}

</mosaic_0001>

<llo_original>
// kernel: tpu_custom_call.1
$region0: #{tpu_custom_call.1}
  #allocation0 [shape = 'u32[]', space=smem, size = 0x4, offset = 0x4, fixed_abs, tag = 'smem constant byte address 0x4 - core index']
  #allocation1 [shape = 'u32[72,128]{1,0:T(1,128)}', space=vmem, size = 0x9000, scoped, tag = 'internal scratch']
  %s0 = inlined_call_operand.hbm [shape: f32[2,4,256], index: 0, kind: input, shape index: {}]
  %s1 = inlined_call_operand.hbm [shape: f32[2,4,256], index: 1, kind: input, shape index: {}]
  %s2 = inlined_call_operand.hbm [shape: f32[1,2,4], index: 2, kind: output, shape index: {0}]
  %s3 = inlined_call_operand.hbm [shape: f32[1,2,4], index: 3, kind: output, shape index: {1}]
  %4 = xla_tuple %s2, %s3
  %s5 = sld [smem:[#allocation0]]
  $region38: #{tpu_custom_call.1} parent=0
    _
  %s7 = ssub.s32 1, %s5
  %s8 = scalar_select 0, %s7, %s5
  $region1: #{tpu_custom_call.1} parent=0
    #allocation2 [shape = 'u8[8192]{0}', space=vmem, size = 0x2000, scoped, tag = 'input window, operand 0, single buffered']
    #allocation3 [shape = 's32[1]{0}', space=sflag, size = 0x4, scoped, tag = 'scoped memory for tpu_custom_call.1']
    #allocation4 [shape = 's32[1]{0}', space=sflag, size = 0x4, scoped, tag = 'scoped memory for tpu_custom_call.1']
    #allocation5 [shape = 'u8[8192]{0}', space=vmem, size = 0x2000, scoped, tag = 'input window, operand 1, single buffered']
    #allocation6 [shape = 's32[1]{0}', space=sflag, size = 0x4, scoped, tag = 'scoped memory for tpu_custom_call.1']
    #allocation7 [shape = 'u8[1024]{0}', space=vmem, size = 0x400, scoped, tag = 'output window, operand 0, single buffered']
    #allocation8 [shape = 'u8[1024]{0}', space=vmem, size = 0x400, scoped, tag = 'output window, operand 1, single buffered']
    #allocation9 [shape = 's32[1]{0}', space=sflag, size = 0x4, scoped, tag = 'scoped memory for tpu_custom_call.1']
    %9 = vsyncpa [#allocation3], 0
    %10 = vsyncpa [#allocation6], 0
    %11 = vsyncpa [#allocation4], 0
    %12 = vsyncpa [#allocation9], 0
    // Predicated region
    $region2: #{tpu_custom_call.1} parent=1 // pred_check
      _
    $region3: #{tpu_custom_call.1} parent=1 // pred_check_branch
      %14 = sbr.rel (0) target = $region5
    $region4: #{tpu_custom_call.1} parent=1 // pred_region
      %16 = vsyncadd [#allocation3], 0
      %s17 = sshll.u32 %s0, 4
      %s18 = int_to_ptr.hbm [resolvable:$true] %s17
      %s19 = sshll.u32 [#allocation2], 4
      %s20 = int_to_ptr.vmem [resolvable:$true] %s19
      %25 = dma.hbm_to_vmem [thread:$0]  %s18, 256, %s20, [#allocation3], 128, 128, 8
    $region5: #{tpu_custom_call.1} parent=1 // pred_fallthru
      _
    // Predicated region
    $region6: #{tpu_custom_call.1} parent=1 // pred_check
      _
    $region7: #{tpu_custom_call.1} parent=1 // pred_check_branch
      %27 = sbr.rel (0) target = $region9
    $region8: #{tpu_custom_call.1} parent=1 // pred_region
      %29 = vsyncadd [#allocation6], 0
      %s30 = sshll.u32 %s1, 4
      %s31 = int_to_ptr.hbm [resolvable:$true] %s30
      %s32 = sshll.u32 [#allocation5], 4
      %s33 = int_to_ptr.vmem [resolvable:$true] %s32
      %38 = dma.hbm_to_vmem [thread:$0]  %s31, 256, %s33, [#allocation6], 128, 128, 8
    $region9: #{tpu_custom_call.1} parent=1 // pred_fallthru
      _
    // Predicated region
    $region10: #{tpu_custom_call.1} parent=1 // pred_check
      _
    $region11: #{tpu_custom_call.1} parent=1 // pred_check_branch
      %40 = sbr.rel (0) target = $region13
    $region12: #{tpu_custom_call.1} parent=1 // pred_region
      %42 = dma.done [#allocation3], 256
    $region13: #{tpu_custom_call.1} parent=1 // pred_fallthru
      _
    // Predicated region
    $region14: #{tpu_custom_call.1} parent=1 // pred_check
      _
    $region15: #{tpu_custom_call.1} parent=1 // pred_check_branch
      %44 = sbr.rel (0) target = $region17
    $region16: #{tpu_custom_call.1} parent=1 // pred_region
      %46 = dma.done [#allocation6], 256
    $region17: #{tpu_custom_call.1} parent=1 // pred_fallthru
      _
    %p47 = scmp.eq.s32.totalorder 0, 0
    // Predicated region
    $region18: #{tpu_custom_call.1} parent=1 // pred_check
      %p48 = pneg %p47
    $region19: #{tpu_custom_call.1} parent=1 // pred_check_branch
      %50 = sbr.rel (%p48) target = $region21
    $region20: #{tpu_custom_call.1} parent=1 // pred_region
      %vm51 = vcmask 25600
      %52 = vst.msk [vmem:[#allocation7] sm:$0x3] %vm51, 0.0
      %53 = vst.msk [vmem:[#allocation8] sm:$0x3] %vm51, 0.0
    $region21: #{tpu_custom_call.1} parent=1 // pred_fallthru
      _
    %v54 = vld [vmem:[#allocation2] sm:$0xff]
    %v55 = vld [vmem:[#allocation2 + $0x8] sm:$0xff]
    %v56 = vld [vmem:[#allocation5] sm:$0xff]
    %v57 = vld [vmem:[#allocation5 + $0x8] sm:$0xff]
    %60 = vst [vmem:[#allocation1] ss:$2 sm:$0xff] %v54
    %v61 = vld.sshfl [vmem:[#allocation1] sm:$0xff pattern:$0x75316420]
    %v62 = vld.sshfl [vmem:[#allocation1 + $0x8] sm:$0xff pattern:$0x75316420]
    %s63 = scalar_lea.vmem [#allocation1], 16
    %64 = vst [vmem:[%s63] ss:$2 sm:$0xff] %v55
    %v65 = vld.sshfl [vmem:[#allocation1 + $0x10] sm:$0xff pattern:$0x75316420]
    %v66 = vld.sshfl [vmem:[#allocation1 + $0x18] sm:$0xff pattern:$0x75316420]
    %vm71 = vcmask 1043456
    %v72 = vsel %vm71, %v61, -inf
    %v73 = vrot.slane %v72, 4
    %v74 = vmax.f32 %v72, %v73
    %v75 = vrot.slane %v74, 2
    %v76 = vmax.f32 %v74, %v75
    %v77 = vrot.slane %v76, 1
    %v78 = vmax.f32 %v76, %v77
    %v79 = vsel %vm71, %v62, -inf
    %v80 = vrot.slane %v79, 4
    %v81 = vmax.f32 %v79, %v80
    %v82 = vrot.slane %v81, 2
    %v83 = vmax.f32 %v81, %v82
    %v84 = vrot.slane %v83, 1
    %v85 = vmax.f32 %v83, %v84
    %v86 = vsel %vm71, %v65, -inf
    %v87 = vrot.slane %v86, 4
    %v88 = vmax.f32 %v86, %v87
    %v89 = vrot.slane %v88, 2
    %v90 = vmax.f32 %v88, %v89
    %v91 = vrot.slane %v90, 1
    %v92 = vmax.f32 %v90, %v91
    %v93 = vsel %vm71, %v66, -inf
    %v94 = vrot.slane %v93, 4
    %v95 = vmax.f32 %v93, %v94
    %v96 = vrot.slane %v95, 2
    %v97 = vmax.f32 %v95, %v96
    %v98 = vrot.slane %v97, 1
    %v99 = vmax.f32 %v97, %v98
    %v104 = vrot.slane %v85, 4
    %v105 = vrot.slane %v99, 4
    %v106 = vsel %vm71, %v78, %v104
    %v107 = vsel %vm71, %v92, %v105
    %v110 = vsub.f32 %v54, %v106
    %v111 = vsub.f32 %v55, %v107
    %v112 = vmul.f32 %v110, 1.442695
    %v113 = vpow.pop %v112
    %v114 = vmul.f32 %v111, 1.442695
    %v115 = vpow.pop %v114
    %118 = vst [vmem:[#allocation1] ss:$2 sm:$0xff] %v113
    %v119 = vld.sshfl [vmem:[#allocation1] sm:$0xff pattern:$0x75316420]
    %v120 = vld.sshfl [vmem:[#allocation1 + $0x8] sm:$0xff pattern:$0x75316420]
    %s121 = scalar_lea.vmem [#allocation1], 16
    %122 = vst [vmem:[%s121] ss:$2 sm:$0xff] %v115
    %v123 = vld.sshfl [vmem:[#allocation1 + $0x10] sm:$0xff pattern:$0x75316420]
    %v124 = vld.sshfl [vmem:[#allocation1 + $0x18] sm:$0xff pattern:$0x75316420]
    %v129 = vsel %vm71, %v119, 0.0
    %v130 = vrot.slane %v129, 4
    %v131 = vadd.f32 %v129, %v130
    %v132 = vrot.slane %v131, 2
    %v133 = vadd.f32 %v131, %v132
    %v134 = vrot.slane %v133, 1
    %v135 = vadd.f32 %v133, %v134
    %v136 = vsel %vm71, %v120, 0.0
    %v137 = vrot.slane %v136, 4
    %v138 = vadd.f32 %v136, %v137
    %v139 = vrot.slane %v138, 2
    %v140 = vadd.f32 %v138, %v139
    %v141 = vrot.slane %v140, 1
    %v142 = vadd.f32 %v140, %v141
    %v143 = vsel %vm71, %v123, 0.0
    %v144 = vrot.slane %v143, 4
    %v145 = vadd.f32 %v143, %v144
    %v146 = vrot.slane %v145, 2
    %v147 = vadd.f32 %v145, %v146
    %v148 = vrot.slane %v147, 1
    %v149 = vadd.f32 %v147, %v148
    %v150 = vsel %vm71, %v124, 0.0
    %v151 = vrot.slane %v150, 4
    %v152 = vadd.f32 %v150, %v151
    %v153 = vrot.slane %v152, 2
    %v154 = vadd.f32 %v152, %v153
    %v155 = vrot.slane %v154, 1
    %v156 = vadd.f32 %v154, %v155
    %v157 = vrcp.pop %v135
    %v158 = vmul.f32 %v135, %v157
    %v159 = vsub.f32 1.0, %v158
    %v160 = vmul.f32 %v157, %v159
    %v161 = vadd.f32 %v157, %v160
    %vm162 = vweird.f32 %v135
    %vm163 = vweird.f32 %v157
    %vm164 = vmor %vm162, %vm163
    %v165 = vsel %vm164, %v157, %v161
    %v166 = vand.u32 2147483647, %v135
    %vm167 = vcmp.eq.f32.partialorder %v166, 8.507059e+37
    %v168 = vand.u32 %v135, 2147483648
    %v169 = vor.u32 1.1754944e-38, %v168
    %v170 = vsel %vm167, %v169, %v165
    %v171 = vrcp.pop %v142
    %v172 = vmul.f32 %v142, %v171
    %v173 = vsub.f32 1.0, %v172
    %v174 = vmul.f32 %v171, %v173
    %v175 = vadd.f32 %v171, %v174
    %vm176 = vweird.f32 %v142
    %vm177 = vweird.f32 %v171
    %vm178 = vmor %vm176, %vm177
    %v179 = vsel %vm178, %v171, %v175
    %v180 = vand.u32 2147483647, %v142
    %vm181 = vcmp.eq.f32.partialorder %v180, 8.507059e+37
    %v182 = vand.u32 %v142, 2147483648
    %v183 = vor.u32 1.1754944e-38, %v182
    %v184 = vsel %vm181, %v183, %v179
    %v185 = vrcp.pop %v149
    %v186 = vmul.f32 %v149, %v185
    %v187 = vsub.f32 1.0, %v186
    %v188 = vmul.f32 %v185, %v187
    %v189 = vadd.f32 %v185, %v188
    %vm190 = vweird.f32 %v149
    %vm191 = vweird.f32 %v185
    %vm192 = vmor %vm190, %vm191
    %v193 = vsel %vm192, %v185, %v189
    %v194 = vand.u32 2147483647, %v149
    %vm195 = vcmp.eq.f32.partialorder %v194, 8.507059e+37
    %v196 = vand.u32 %v149, 2147483648
    %v197 = vor.u32 1.1754944e-38, %v196
    %v198 = vsel %vm195, %v197, %v193
    %v199 = vrcp.pop %v156
    %v200 = vmul.f32 %v156, %v199
    %v201 = vsub.f32 1.0, %v200
    %v202 = vmul.f32 %v199, %v201
    %v203 = vadd.f32 %v199, %v202
    %vm204 = vweird.f32 %v156
    %vm205 = vweird.f32 %v199
    %vm206 = vmor %vm204, %vm205
    %v207 = vsel %vm206, %v199, %v203
    %v208 = vand.u32 2147483647, %v156
    %vm209 = vcmp.eq.f32.partialorder %v208, 8.507059e+37
    %v210 = vand.u32 %v156, 2147483648
    %v211 = vor.u32 1.1754944e-38, %v210
    %v212 = vsel %vm209, %v211, %v207
    %v217 = vrot.slane %v184, 4
    %v218 = vrot.slane %v212, 4
    %v219 = vsel %vm71, %v170, %v217
    %v220 = vsel %vm71, %v198, %v218
    %v223 = vmul.f32 %v113, %v219
    %v224 = vmul.f32 %v115, %v220
    %v225 = vld [vmem:[#allocation7] sm:$0x3]
    %v226 = vmul.f32 %v223, %v56
    %v227 = vmul.f32 %v224, %v57
    %230 = vst [vmem:[#allocation1] ss:$2 sm:$0xff] %v226
    %v231 = vld.sshfl [vmem:[#allocation1] sm:$0xff pattern:$0x75316420]
    %v232 = vld.sshfl [vmem:[#allocation1 + $0x8] sm:$0xff pattern:$0x75316420]
    %s233 = scalar_lea.vmem [#allocation1], 16
    %234 = vst [vmem:[%s233] ss:$2 sm:$0xff] %v227
    %v235 = vld.sshfl [vmem:[#allocation1 + $0x10] sm:$0xff pattern:$0x75316420]
    %v236 = vld.sshfl [vmem:[#allocation1 + $0x18] sm:$0xff pattern:$0x75316420]
    %v241 = vsel %vm71, %v231, 0.0
    %v242 = vsel %vm71, %v232, 0.0
    %v243 = vadd.f32 %v241, %v242
    %244 = vadd.xlane.f32.xlu0 %v243
    %v245 = vpop.xlane.xlu0 %244
    %v246 = vsel %vm71, %v235, 0.0
    %v247 = vsel %vm71, %v236, 0.0
    %v248 = vadd.f32 %v246, %v247
    %249 = vadd.xlane.f32.xlu0 %v248
    %v250 = vpop.xlane.xlu0 %249
    %v253 = vlaneseq
    %v254 = vand.u32 %v253, 127
    %v255 = vperm.slane %v245, %v254
    %v256 = vperm.slane %v250, %v254
    %vm257 = vcmask 1041409
    %v258 = vsel %vm257, %v256, %v255
    %v260 = vadd.f32 %v225, %v258
    %vm261 = vcmask 25600
    %262 = vst.msk [vmem:[#allocation7] sm:$0x3] %vm261, %v260
    %v263 = vld [vmem:[#allocation8] sm:$0x3]
    %266 = vst [vmem:[#allocation1] ss:$2 sm:$0xff] %v223
    %v267 = vld.sshfl [vmem:[#allocation1] sm:$0xff pattern:$0x75316420]
    %v268 = vld.sshfl [vmem:[#allocation1 + $0x8] sm:$0xff pattern:$0x75316420]
    %s269 = scalar_lea.vmem [#allocation1], 16
    %270 = vst [vmem:[%s269] ss:$2 sm:$0xff] %v224
    %v271 = vld.sshfl [vmem:[#allocation1 + $0x10] sm:$0xff pattern:$0x75316420]
    %v272 = vld.sshfl [vmem:[#allocation1 + $0x18] sm:$0xff pattern:$0x75316420]
    %v277 = vsel %vm71, %v267, 0.0
    %v278 = vsel %vm71, %v268, 0.0
    %v279 = vadd.f32 %v277, %v278
    %280 = vadd.xlane.f32.xlu0 %v279
    %v281 = vpop.xlane.xlu0 %280
    %v282 = vsel %vm71, %v271, 0.0
    %v283 = vsel %vm71, %v272, 0.0
    %v284 = vadd.f32 %v282, %v283
    %285 = vadd.xlane.f32.xlu0 %v284
    %v286 = vpop.xlane.xlu0 %285
    %289 = vst [vmem:[#allocation1] ss:$2 sm:$0xff] %v56
    %v290 = vld.sshfl [vmem:[#allocation1] sm:$0xff pattern:$0x75316420]
    %v291 = vld.sshfl [vmem:[#allocation1 + $0x8] sm:$0xff pattern:$0x75316420]
    %s292 = scalar_lea.vmem [#allocation1], 16
    %293 = vst [vmem:[%s292] ss:$2 sm:$0xff] %v57
    %v294 = vld.sshfl [vmem:[#allocation1 + $0x10] sm:$0xff pattern:$0x75316420]
    %v295 = vld.sshfl [vmem:[#allocation1 + $0x18] sm:$0xff pattern:$0x75316420]
    %v300 = vsel %vm71, %v290, 0.0
    %v301 = vsel %vm71, %v291, 0.0
    %v302 = vadd.f32 %v300, %v301
    %303 = vadd.xlane.f32.xlu0 %v302
    %v304 = vpop.xlane.xlu0 %303
    %v305 = vsel %vm71, %v294, 0.0
    %v306 = vsel %vm71, %v295, 0.0
    %v307 = vadd.f32 %v305, %v306
    %308 = vadd.xlane.f32.xlu0 %v307
    %v309 = vpop.xlane.xlu0 %308
    %v310 = vadd.f32 %v281, %v304
    %v311 = vadd.f32 %v286, %v309
    %v314 = vperm.slane %v310, %v254
    %v315 = vperm.slane %v311, %v254
    %v316 = vsel %vm257, %v315, %v314
    %v318 = vadd.f32 %v263, %v316
    %319 = vst.msk [vmem:[#allocation8] sm:$0x3] %vm261, %v318
    // Predicated region
    $region22: #{tpu_custom_call.1} parent=1 // pred_check
      _
    $region23: #{tpu_custom_call.1} parent=1 // pred_check_branch
      %321 = sbr.rel (0) target = $region25
    $region24: #{tpu_custom_call.1} parent=1 // pred_region
      %323 = vsyncadd [#allocation4], 0
      %s325 = sshll.u32 [#allocation7], 4
      %s326 = int_to_ptr.vmem [resolvable:$true] %s325
      %s327 = sshll.u32 %s2, 4
      %s328 = int_to_ptr.hbm [resolvable:$true] %s327
      %330 = dma.vmem_to_hbm [thread:$0]  %s326, 32, %s328, [#allocation4]
    $region25: #{tpu_custom_call.1} parent=1 // pred_fallthru
      _
    // Predicated region
    $region26: #{tpu_custom_call.1} parent=1 // pred_check
      _
    $region27: #{tpu_custom_call.1} parent=1 // pred_check_branch
      %332 = sbr.rel (0) target = $region29
    $region28: #{tpu_custom_call.1} parent=1 // pred_region
      %334 = vsyncadd [#allocation9], 0
      %s336 = sshll.u32 [#allocation8], 4
      %s337 = int_to_ptr.vmem [resolvable:$true] %s336
      %s338 = sshll.u32 %s3, 4
      %s339 = int_to_ptr.hbm [resolvable:$true] %s338
      %341 = dma.vmem_to_hbm [thread:$0]  %s337, 32, %s339, [#allocation9]
    $region29: #{tpu_custom_call.1} parent=1 // pred_fallthru
      _
    // Predicated region
    $region30: #{tpu_custom_call.1} parent=1 // pred_check
      _
    $region31: #{tpu_custom_call.1} parent=1 // pred_check_branch
      %343 = sbr.rel (0) target = $region33
    $region32: #{tpu_custom_call.1} parent=1 // pred_region
      %345 = dma.done [#allocation4], 32
    $region33: #{tpu_custom_call.1} parent=1 // pred_fallthru
      _
    // Predicated region
    $region34: #{tpu_custom_call.1} parent=1 // pred_check
      _
    $region35: #{tpu_custom_call.1} parent=1 // pred_check_branch
      %347 = sbr.rel (0) target = $region37
    $region36: #{tpu_custom_call.1} parent=1 // pred_region
      %349 = dma.done [#allocation9], 32
    $region37: #{tpu_custom_call.1} parent=1 // pred_fallthru
      _
    %350 = vsyncpa [#allocation3], 1
    %351 = vsyncpa [#allocation6], 1
    %352 = vsyncpa [#allocation4], 1
    %353 = vsyncpa [#allocation9], 1

</llo_original>
